<compile_context>
chip_gen: v5e
topology: v5e:2x2
jax: 0.10.0
libtpu: 0.0.40
codegen_flags: <defaults>
</compile_context>

<pallas_src>
from functools import partial

import jax
import jax.numpy as jnp
from jax.experimental import pallas as pl
from jax.experimental.pallas import tpu as pltpu

_EPS = 1e-5  # nn.LayerNorm default eps

_COMPILER_PARAMS = pltpu.CompilerParams(
    dimension_semantics=("parallel",),      # independent row tiles -> dual-TC on v7x
    vmem_limit_bytes=48 * 1024 * 1024,      # <= ~48 MiB: safe on v7x (64 MiB VMEM/TC)
)


# ----------------------------- helpers --------------------------------------


def _round_up(v, m):
    return -(-v // m) * m


def _row_tile(rows, row_bytes, *, target_bytes=4 << 20, max_rows=2048):
    """Pick a multiple-of-8 row tile.  It need NOT divide `rows` (ragged tail is
    handled by pl.cdiv grids); when the whole array would fit in one block we
    split into >= 2 grid steps so both v7x TensorCores get work."""
    if rows <= 8:
        return rows  # full extent is always a legal block dim
    tm = (target_bytes // max(row_bytes, 1)) // 8 * 8
    tm = max(8, min(tm, max_rows, _round_up(rows, 8)))
    if tm >= rows:
        if rows >= 16:
            tm = max(8, _round_up((rows + 1) // 2, 8))  # exactly 2 grid steps
        else:
            tm = rows  # small full-extent block (legal even if % 8 != 0)
    return tm


# ----------------------------- kernels --------------------------------------


def _layernorm_kernel(x_ref, g_ref, b_ref, o_ref, *, eps):
    # x_ref/o_ref: (tm, dim); g_ref/b_ref: (1, dim).  Stats in f32.
    x = x_ref[...].astype(jnp.float32)
    mean = jnp.mean(x, axis=-1, keepdims=True)
    var = jnp.mean(x * x, axis=-1, keepdims=True) - mean * mean   # one-pass stats
    inv = jax.lax.rsqrt(var + eps)
    scale = inv * g_ref[...].astype(jnp.float32)                  # (tm,1)*(1,dim)
    shift = b_ref[...].astype(jnp.float32) - mean * scale
    o_ref[...] = (x * scale + shift).astype(o_ref.dtype)


def _ln_linear_residual_kernel(x_ref, g_ref, b_ref, w_ref, bias_ref, o_ref, *, eps):
    # Fused: LayerNorm -> Linear(dim, dim) -> +bias -> +x residual.
    # x_ref/o_ref: (tm, dim); w_ref: (dim, dim); g/b/bias: (1, dim).
    x = x_ref[...].astype(jnp.float32)
    mean = jnp.mean(x, axis=-1, keepdims=True)
    var = jnp.mean(x * x, axis=-1, keepdims=True) - mean * mean
    inv = jax.lax.rsqrt(var + eps)
    scale = inv * g_ref[...].astype(jnp.float32)
    shift = b_ref[...].astype(jnp.float32) - mean * scale
    y = (x * scale + shift).astype(w_ref.dtype)
    z = jnp.dot(y, w_ref[...], preferred_element_type=jnp.float32)     # MXU
    z = z + bias_ref[...].astype(jnp.float32) + x                      # epilogue: bias + residual
    o_ref[...] = z.astype(o_ref.dtype)


# ----------------------------- wrappers -------------------------------------


def layernorm(x, gamma, beta, *, eps=_EPS):
    """LayerNorm over the last dim for any leading shape (Pallas kernel)."""
    dim = x.shape[-1]
    rows = x.size // dim
    x2 = x.reshape(rows, dim)
    g2 = gamma.reshape(1, dim)
    b2 = beta.reshape(1, dim)

    # Size on f32 working set: input tile + output tile + f32 temps.
    tm = _row_tile(rows, dim * (x2.dtype.itemsize + 2 * 4))
    out = pl.pallas_call(
        partial(_layernorm_kernel, eps=eps),
        out_shape=jax.ShapeDtypeStruct((rows, dim), x.dtype),
        grid=(pl.cdiv(rows, tm),),
        in_specs=[
            pl.BlockSpec((tm, dim), lambda i: (i, 0)),
            pl.BlockSpec((1, dim), lambda i: (0, 0)),
            pl.BlockSpec((1, dim), lambda i: (0, 0)),
        ],
        out_specs=pl.BlockSpec((tm, dim), lambda i: (i, 0)),
        compiler_params=_COMPILER_PARAMS,
    )(x2, g2, b2)
    return out.reshape(x.shape)


def pre_norm_residual(x, gamma, beta, fn, *, eps=_EPS):
    """Generic PreNormResidual.forward: fn(LayerNorm(x)) + x, fn opaque."""
    # TODO(synk): an arbitrary wrapped sub-module cannot be fused generically;
    # the residual add is left in plain JAX so XLA fuses it into fn's epilogue.
    y = layernorm(x, gamma, beta, eps=eps)
    return fn(y) + x


def pre_norm_residual_linear(x, gamma, beta, w, bias, *, eps=_EPS):
    """Fused PreNormResidual when fn = Linear(dim, dim):
    one Pallas kernel doing LN -> matmul -> +bias -> +x (single HBM round-trip)."""
    dim = x.shape[-1]
    assert w.shape == (dim, dim), "residual requires fn: dim -> dim"
    rows = x.size // dim
    x2 = x.reshape(rows, dim)
    g2 = gamma.reshape(1, dim)
    b2 = beta.reshape(1, dim)
    bias2 = bias.reshape(1, dim)

    # Budget: x tile + out tile (double-buffered) + f32 LN/acc temps; weight is
    # the same block every grid step so it stays resident in VMEM.
    tm = _row_tile(rows, dim * (2 * x2.dtype.itemsize + 3 * 4), target_bytes=4 << 20)
    out = pl.pallas_call(
        partial(_ln_linear_residual_kernel, eps=eps),
        out_shape=jax.ShapeDtypeStruct((rows, dim), x.dtype),
        grid=(pl.cdiv(rows, tm),),
        in_specs=[
            pl.BlockSpec((tm, dim), lambda i: (i, 0)),
            pl.BlockSpec((1, dim), lambda i: (0, 0)),
            pl.BlockSpec((1, dim), lambda i: (0, 0)),
            pl.BlockSpec((dim, dim), lambda i: (0, 0)),   # weight resident across steps
            pl.BlockSpec((1, dim), lambda i: (0, 0)),
        ],
        out_specs=pl.BlockSpec((tm, dim), lambda i: (i, 0)),
        compiler_params=_COMPILER_PARAMS,
    )(x2, g2, b2, w, bias2)
    return out.reshape(x.shape)


# ----------------------------- demo / test ----------------------------------

if __name__ == "__main__":
    key = jax.random.PRNGKey(0)
    kx, kw, kb = jax.random.split(key, 3)

    # MaxViT-style windowed activation: (batch, window, window, dim).
    B, H, W, D = 2, 8, 8, 128
    x = jax.random.normal(kx, (B, H, W, D), dtype=jnp.float32)

    gamma = jnp.full((D,), 1.5, dtype=jnp.float32)
    beta = jnp.full((D,), 0.25, dtype=jnp.float32)

    # Example `fn`: Linear(D, D) with bias.
    w_fn = 0.02 * jax.random.normal(kw, (D, D), dtype=jnp.float32)
    bias_fn = 0.1 * jax.random.normal(kb, (D,), dtype=jnp.float32)
    fn = lambda t: jnp.dot(t, w_fn) + bias_fn

    # Pure-JAX reference (two-pass LN stats, same math as nn.LayerNorm).
    mean = x.mean(-1, keepdims=True)
    var = ((x - mean) ** 2).mean(-1, keepdims=True)
    y_ref = (x - mean) / jnp.sqrt(var + _EPS) * gamma + beta
    ref = fn(y_ref) + x

    # 1) Fused path: single kernel LN -> MXU matmul -> +bias -> +x residual.
    out_fused = jax.block_until_ready(
        pre_norm_residual_linear(x, gamma, beta, w_fn, bias_fn))
    # 2) Generic path: Pallas LN, residual add left to XLA fusion.
    out_generic = jax.block_until_ready(pre_norm_residual(x, gamma, beta, fn))

    assert out_fused.shape == x.shape and out_generic.shape == x.shape
    assert jnp.allclose(out_fused, ref, atol=5e-4, rtol=5e-4), "fused path mismatch"
    assert jnp.allclose(out_generic, ref, atol=5e-4, rtol=5e-4), "generic path mismatch"

    print("KERNEL_OK")
</pallas_src>

<mosaic_0001>
module attributes {stable_mosaic.version = 11 : i64} {
  func.func @_ln_linear_residual_kernel(%arg0: i32, %arg1: memref<64x128xf32, #tpu.memory_space<vmem>>, %arg2: memref<1x128xf32, #tpu.memory_space<vmem>>, %arg3: memref<1x128xf32, #tpu.memory_space<vmem>>, %arg4: memref<128x128xf32, #tpu.memory_space<vmem>>, %arg5: memref<1x128xf32, #tpu.memory_space<vmem>>, %arg6: memref<64x128xf32, #tpu.memory_space<vmem>>) attributes {dimension_semantics = [#tpu.dimension_semantics<parallel>], iteration_bounds = array<i64: 2>, scalar_prefetch = 0 : i64, scratch_operands = 0 : i64, tpu.core_type = #tpu.core_type<tc>, window_params = [{transform_indices = @transform_0, window_bounds = array<i64: 64, 128>}, {pipeline_mode = #tpu.pipeline_mode<synchronous>, transform_indices = @transform_1, window_bounds = array<i64: 1, 128>}, {pipeline_mode = #tpu.pipeline_mode<synchronous>, transform_indices = @transform_2, window_bounds = array<i64: 1, 128>}, {pipeline_mode = #tpu.pipeline_mode<synchronous>, transform_indices = @transform_3, window_bounds = array<i64: 128, 128>}, {pipeline_mode = #tpu.pipeline_mode<synchronous>, transform_indices = @transform_4, window_bounds = array<i64: 1, 128>}, {transform_indices = @transform_5, window_bounds = array<i64: 64, 128>}]} {
    %c0 = arith.constant 0 : index
    %c0_0 = arith.constant 0 : index
    %0 = vector.load %arg1[%c0, %c0_0] : memref<64x128xf32, #tpu.memory_space<vmem>>, vector<64x128xf32>
    %cst = arith.constant dense<0.000000e+00> : vector<64xf32>
    %1 = vector.multi_reduction <add>, %0, %cst [1] : vector<64x128xf32> to vector<64xf32>
    %2 = vector.shape_cast %1 : vector<64xf32> to vector<64x1xf32>
    %cst_1 = arith.constant 1.280000e+02 : f32
    %3 = vector.broadcast %cst_1 : f32 to vector<64x1xf32>
    %4 = arith.divf %2, %3 : vector<64x1xf32>
    %5 = arith.mulf %0, %0 : vector<64x128xf32>
    %cst_2 = arith.constant dense<0.000000e+00> : vector<64xf32>
    %6 = vector.multi_reduction <add>, %5, %cst_2 [1] : vector<64x128xf32> to vector<64xf32>
    %7 = vector.shape_cast %6 : vector<64xf32> to vector<64x1xf32>
    %cst_3 = arith.constant 1.280000e+02 : f32
    %8 = vector.broadcast %cst_3 : f32 to vector<64x1xf32>
    %9 = arith.divf %7, %8 : vector<64x1xf32>
    %10 = arith.mulf %4, %4 : vector<64x1xf32>
    %11 = arith.subf %9, %10 : vector<64x1xf32>
    %cst_4 = arith.constant 9.99999974E-6 : f32
    %12 = vector.broadcast %cst_4 : f32 to vector<64x1xf32>
    %13 = arith.addf %11, %12 : vector<64x1xf32>
    %14 = math.rsqrt %13 : vector<64x1xf32>
    %c0_5 = arith.constant 0 : index
    %c0_6 = arith.constant 0 : index
    %15 = vector.load %arg2[%c0_5, %c0_6] : memref<1x128xf32, #tpu.memory_space<vmem>>, vector<1x128xf32>
    %16 = vector.broadcast %14 : vector<64x1xf32> to vector<64x128xf32>
    %17 = vector.broadcast %15 : vector<1x128xf32> to vector<64x128xf32>
    %18 = arith.mulf %16, %17 : vector<64x128xf32>
    %c0_7 = arith.constant 0 : index
    %c0_8 = arith.constant 0 : index
    %19 = vector.load %arg3[%c0_7, %c0_8] : memref<1x128xf32, #tpu.memory_space<vmem>>, vector<1x128xf32>
    %20 = vector.broadcast %4 : vector<64x1xf32> to vector<64x128xf32>
    %21 = arith.mulf %20, %18 : vector<64x128xf32>
    %22 = vector.broadcast %19 : vector<1x128xf32> to vector<64x128xf32>
    %23 = arith.subf %22, %21 : vector<64x128xf32>
    %24 = arith.mulf %0, %18 : vector<64x128xf32>
    %25 = arith.addf %24, %23 : vector<64x128xf32>
    %c0_9 = arith.constant 0 : index
    %c0_10 = arith.constant 0 : index
    %26 = vector.load %arg4[%c0_9, %c0_10] : memref<128x128xf32, #tpu.memory_space<vmem>>, vector<128x128xf32>
    %cst_11 = arith.constant dense<0.000000e+00> : vector<64x128xf32>
    %27 = tpu.matmul %25, %26, %cst_11 {dimension_numbers = #tpu.dot_dimension_numbers<[1], [0], [0], [1], [0, 0, 1, 1], [], []>} : vector<64x128xf32>, vector<128x128xf32>, vector<64x128xf32> -> vector<64x128xf32>
    %c0_12 = arith.constant 0 : index
    %c0_13 = arith.constant 0 : index
    %28 = vector.load %arg5[%c0_12, %c0_13] : memref<1x128xf32, #tpu.memory_space<vmem>>, vector<1x128xf32>
    %29 = vector.broadcast %28 : vector<1x128xf32> to vector<64x128xf32>
    %30 = arith.addf %27, %29 : vector<64x128xf32>
    %31 = arith.addf %30, %0 : vector<64x128xf32>
    %c0_14 = arith.constant 0 : index
    %c0_15 = arith.constant 0 : index
    %32 = vector.load %arg6[%c0_14, %c0_15] : memref<64x128xf32, #tpu.memory_space<vmem>>, vector<64x128xf32>
    tpu.vector_store %arg6[%c0_14, %c0_15], %31 {strides = array<i32>} : memref<64x128xf32, #tpu.memory_space<vmem>>, vector<64x128xf32>,
    return
  }
  func.func @transform_0(%arg0: i32) -> (i32, i32) {
    %c0_i32 = arith.constant 0 : i32
    %c0_i32_0 = arith.constant 0 : i32
    return %arg0, %c0_i32 : i32, i32
  }
  func.func @transform_1(%arg0: i32) -> (i32, i32) {
    %c0_i32 = arith.constant 0 : i32
    %c0_i32_0 = arith.constant 0 : i32
    %c0_i32_1 = arith.constant 0 : i32
    return %c0_i32, %c0_i32_0 : i32, i32
  }
  func.func @transform_2(%arg0: i32) -> (i32, i32) {
    %c0_i32 = arith.constant 0 : i32
    %c0_i32_0 = arith.constant 0 : i32
    %c0_i32_1 = arith.constant 0 : i32
    return %c0_i32, %c0_i32_0 : i32, i32
  }
  func.func @transform_3(%arg0: i32) -> (i32, i32) {
    %c0_i32 = arith.constant 0 : i32
    %c0_i32_0 = arith.constant 0 : i32
    %c0_i32_1 = arith.constant 0 : i32
    return %c0_i32, %c0_i32_0 : i32, i32
  }
  func.func @transform_4(%arg0: i32) -> (i32, i32) {
    %c0_i32 = arith.constant 0 : i32
    %c0_i32_0 = arith.constant 0 : i32
    %c0_i32_1 = arith.constant 0 : i32
    return %c0_i32, %c0_i32_0 : i32, i32
  }
  func.func @transform_5(%arg0: i32) -> (i32, i32) {
    %c0_i32 = arith.constant 0 : i32
    %c0_i32_0 = arith.constant 0 : i32
    return %arg0, %c0_i32 : i32, i32
  }
}

</mosaic_0001>

<llo_original>
// kernel: tpu_custom_call.1
$region0: #{tpu_custom_call.1}
  #allocation0 [shape = 'u32[]', space=smem, size = 0x4, offset = 0x4, fixed_abs, tag = 'smem constant byte address 0x4 - core index']
  #allocation1 [shape = 'u32[72,128]{1,0:T(1,128)}', space=vmem, size = 0x9000, scoped, tag = 'internal scratch']
  %s0 = inlined_call_operand.hbm [shape: f32[128,128], index: 0, kind: input, shape index: {}]
  %s1 = inlined_call_operand.hbm [shape: f32[1,128], index: 1, kind: input, shape index: {}]
  %s2 = inlined_call_operand.vmem [shape: f32[1,128], index: 2, kind: input, shape index: {}]
  %s3 = inlined_call_operand.hbm [shape: f32[128,128], index: 3, kind: input, shape index: {}]
  %s4 = inlined_call_operand.vmem [shape: f32[1,128], index: 4, kind: input, shape index: {}]
  %s5 = inlined_call_operand.hbm [shape: f32[128,128], index: 5, kind: output, shape index: {}]
  %s6 = sld [smem:[#allocation0]]
  $region65: #{tpu_custom_call.1} parent=0
    _
  %s8 = ssub.s32 1, %s6
  %s9 = scalar_select 0, %s8, %s6
  $region1: #{tpu_custom_call.1} parent=0
    #allocation2 [shape = 'u8[65536]{0}', space=vmem, size = 0x10000, scoped, tag = 'input window, operand 0']
    #allocation3 [shape = 's32[2]{0}', space=sflag, size = 0x8, scoped, tag = 'scoped memory for tpu_custom_call.1']
    #allocation4 [shape = 's32[2]{0}', space=sflag, size = 0x8, scoped, tag = 'scoped memory for tpu_custom_call.1']
    #allocation5 [shape = 'u8[512]{0}', space=vmem, size = 0x400, scoped, tag = 'input window, operand 1, single buffered']
    #allocation6 [shape = 's32[1]{0}', space=sflag, size = 0x4, scoped, tag = 'scoped memory for tpu_custom_call.1']
    #allocation7 [shape = 'u8[65536]{0}', space=vmem, size = 0x10000, scoped, tag = 'input window, operand 3, single buffered']
    #allocation8 [shape = 'u8[65536]{0}', space=vmem, size = 0x10000, scoped, tag = 'output window, operand 0']
    %10 = vsyncpa [#allocation3], 0
    %s11 = scalar_lea.sflag [#allocation3], 1
    %12 = vsyncpa %s11, 0
    %13 = vsyncpa [#allocation6], 0
    %14 = vsyncpa [#allocation4], 0
    %s15 = scalar_lea.sflag [#allocation4], 1
    %16 = vsyncpa %s15, 0
    loop: start=0, step=1, limit=4
    $region2: #{tpu_custom_call.1} parent=1 // loop_pre_header
      _
    $region3: #{tpu_custom_call.1} parent=1 // loop_header
      %s18 = sphi 0, %s22
      %p19 = scmp.ge.s32.totalorder %s18, 4
      %s28 = sphi 0, %s30
      %s31 = sphi 0, %s28
      %s32 = sphi 0, %s31
      %s48 = sphi 0, %s32
      %s52 = sphi 0, %s52
      %s54 = sphi 0, %s52
      %s55 = sphi 0, %s54
      %s69 = sphi 0, %s55
      %s73 = sphi 0, %s73
      %s75 = sphi 0, %s73
      %s76 = sphi 0, %s75
      %s90 = sphi 0, %s76
      %s94 = sphi 0, %s94
      %s96 = sphi 0, %s94
      %s97 = sphi 0, %s96
      %s111 = sphi 0, %s97
      %s115 = sphi 0, %s115
      %s117 = sphi 0, %s115
      %s118 = sphi 0, %s117
      %s132 = sphi 0, %s118
      %s138 = sphi 0, %s140
      %s141 = sphi 0, %s138
      %s142 = sphi 0, %s141
      %s158 = sphi 0, %s142
    $region4: #{tpu_custom_call.1} parent=1 // loop_header_branch
      %21 = sbr.rel (%p19) target = $region8
    $region5: #{tpu_custom_call.1} parent=1 // loop_body
      %s23 = ssub.s32 %s18, 1
      %s24 = ssub.s32 %s18, 2
      %s25 = sadd.s32 %s18, 1
      %s26 = ssub.s32 %s18, %s25
      %p27 = scmp.eq.s32.totalorder %s26, 0
      %s29 = sadd.s32 %s28, 1
      %s30 = scalar_select %p27, %s28, %s29
      %p33 = pneg %p27
      %p34 = scmp.eq.s32.totalorder %s18, 1
      %p35 = por %p33, %p34
      %p36 = scmp.ne.s32.totalorder %s28, %s31
      %p37 = scmp.eq.s32.totalorder %s18, 0
      %p38 = por %p36, %p37
      %p39 = scmp.ne.s32.totalorder %s28, %s31
      %p40 = scmp.eq.s32.totalorder %s23, 1
      %p41 = por %p39, %p40
      %p42 = scmp.ne.s32.totalorder %s31, %s32
      %p43 = scmp.eq.s32.totalorder %s23, 0
      %p44 = por %p42, %p43
      %p45 = scmp.ne.s32.totalorder %s31, %s32
      %p46 = scmp.eq.s32.totalorder %s24, 1
      %p47 = por %p45, %p46
      %p49 = scmp.ne.s32.totalorder %s32, %s48
      %p50 = scmp.eq.s32.totalorder %s24, 0
      %p51 = por %p49, %p50
      %s53 = sadd.s32 %s52, 1
      %p56 = scmp.eq.s32.totalorder %s18, 1
      %p57 = scmp.ne.s32.totalorder %s52, %s54
      %p58 = scmp.eq.s32.totalorder %s18, 0
      %p59 = por %p57, %p58
      %p60 = scmp.ne.s32.totalorder %s52, %s54
      %p61 = scmp.eq.s32.totalorder %s23, 1
      %p62 = por %p60, %p61
      %p63 = scmp.ne.s32.totalorder %s54, %s55
      %p64 = scmp.eq.s32.totalorder %s23, 0
      %p65 = por %p63, %p64
      %p66 = scmp.ne.s32.totalorder %s54, %s55
      %p67 = scmp.eq.s32.totalorder %s24, 1
      %p68 = por %p66, %p67
      %p70 = scmp.ne.s32.totalorder %s55, %s69
      %p71 = scmp.eq.s32.totalorder %s24, 0
      %p72 = por %p70, %p71
      %s74 = sadd.s32 %s73, 1
      %p77 = scmp.eq.s32.totalorder %s18, 1
      %p78 = scmp.ne.s32.totalorder %s73, %s75
      %p79 = scmp.eq.s32.totalorder %s18, 0
      %p80 = por %p78, %p79
      %p81 = scmp.ne.s32.totalorder %s73, %s75
      %p82 = scmp.eq.s32.totalorder %s23, 1
      %p83 = por %p81, %p82
      %p84 = scmp.ne.s32.totalorder %s75, %s76
      %p85 = scmp.eq.s32.totalorder %s23, 0
      %p86 = por %p84, %p85
      %p87 = scmp.ne.s32.totalorder %s75, %s76
      %p88 = scmp.eq.s32.totalorder %s24, 1
      %p89 = por %p87, %p88
      %p91 = scmp.ne.s32.totalorder %s76, %s90
      %p92 = scmp.eq.s32.totalorder %s24, 0
      %p93 = por %p91, %p92
      %s95 = sadd.s32 %s94, 1
      %p98 = scmp.eq.s32.totalorder %s18, 1
      %p99 = scmp.ne.s32.totalorder %s94, %s96
      %p100 = scmp.eq.s32.totalorder %s18, 0
      %p101 = por %p99, %p100
      %p102 = scmp.ne.s32.totalorder %s94, %s96
      %p103 = scmp.eq.s32.totalorder %s23, 1
      %p104 = por %p102, %p103
      %p105 = scmp.ne.s32.totalorder %s96, %s97
      %p106 = scmp.eq.s32.totalorder %s23, 0
      %p107 = por %p105, %p106
      %p108 = scmp.ne.s32.totalorder %s96, %s97
      %p109 = scmp.eq.s32.totalorder %s24, 1
      %p110 = por %p108, %p109
      %p112 = scmp.ne.s32.totalorder %s97, %s111
      %p113 = scmp.eq.s32.totalorder %s24, 0
      %p114 = por %p112, %p113
      %s116 = sadd.s32 %s115, 1
      %p119 = scmp.eq.s32.totalorder %s18, 1
      %p120 = scmp.ne.s32.totalorder %s115, %s117
      %p121 = scmp.eq.s32.totalorder %s18, 0
      %p122 = por %p120, %p121
      %p123 = scmp.ne.s32.totalorder %s115, %s117
      %p124 = scmp.eq.s32.totalorder %s23, 1
      %p125 = por %p123, %p124
      %p126 = scmp.ne.s32.totalorder %s117, %s118
      %p127 = scmp.eq.s32.totalorder %s23, 0
      %p128 = por %p126, %p127
      %p129 = scmp.ne.s32.totalorder %s117, %s118
      %p130 = scmp.eq.s32.totalorder %s24, 1
      %p131 = por %p129, %p130
      %p133 = scmp.ne.s32.totalorder %s118, %s132
      %p134 = scmp.eq.s32.totalorder %s24, 0
      %p135 = por %p133, %p134
      %s136 = ssub.s32 %s18, %s25
      %p137 = scmp.eq.s32.totalorder %s136, 0
      %s139 = sadd.s32 %s138, 1
      %s140 = scalar_select %p137, %s138, %s139
      %p143 = pneg %p137
      %p144 = scmp.eq.s32.totalorder %s18, 1
      %p145 = por %p143, %p144
      %p146 = scmp.ne.s32.totalorder %s138, %s141
      %p147 = scmp.eq.s32.totalorder %s18, 0
      %p148 = por %p146, %p147
      %p149 = scmp.ne.s32.totalorder %s138, %s141
      %p150 = scmp.eq.s32.totalorder %s23, 1
      %p151 = por %p149, %p150
      %p152 = scmp.ne.s32.totalorder %s141, %s142
      %p153 = scmp.eq.s32.totalorder %s23, 0
      %p154 = por %p152, %p153
      %p155 = scmp.ne.s32.totalorder %s141, %s142
      %p156 = scmp.eq.s32.totalorder %s24, 1
      %p157 = por %p155, %p156
      %p159 = scmp.ne.s32.totalorder %s142, %s158
      %p160 = scmp.eq.s32.totalorder %s24, 0
      %p161 = por %p159, %p160
      %p162 = scmp.le.s32.totalorder 1, %s18
      %p163 = scmp.lt.s32.totalorder %s18, 3
      %p164 = pnand %p162, %p163
      %p165 = pneg %p164
      // Predicated region
      $region9: #{tpu_custom_call.1} parent=5 // pred_check
        _
      $region10: #{tpu_custom_call.1} parent=5 // pred_check_branch
        %167 = sbr.rel (%p164) target = $region12
      $region11: #{tpu_custom_call.1} parent=5 // pred_region
        %s168 = ssub.s32 %s18, 1
        // Predicated region
        $region13: #{tpu_custom_call.1} parent=11 // pred_check
          %p169 = pneg %p65
        $region14: #{tpu_custom_call.1} parent=11 // pred_check_branch
          %171 = sbr.rel (%p169) target = $region16
        $region15: #{tpu_custom_call.1} parent=11 // pred_region
          %173 = vsyncadd [#allocation6], 0
          %s175 = sshll.u32 %s1, 4
          %s176 = int_to_ptr.hbm [resolvable:$true] %s175
          %s177 = sshll.u32 [#allocation5], 4
          %s178 = int_to_ptr.vmem [resolvable:$true] %s177
          %180 = dma.hbm_to_vmem [thread:$0]  %s176, 16, %s178, [#allocation6]
        $region16: #{tpu_custom_call.1} parent=11 // pred_fallthru
          _
        // Predicated region
        $region17: #{tpu_custom_call.1} parent=11 // pred_check
          %p181 = pneg %p86
        $region18: #{tpu_custom_call.1} parent=11 // pred_check_branch
          %183 = sbr.rel (%p181) target = $region20
        $region19: #{tpu_custom_call.1} parent=11 // pred_region
          _
        $region20: #{tpu_custom_call.1} parent=11 // pred_fallthru
          _
        // Predicated region
        $region21: #{tpu_custom_call.1} parent=11 // pred_check
          %p184 = pneg %p107
        $region22: #{tpu_custom_call.1} parent=11 // pred_check_branch
          %186 = sbr.rel (%p184) target = $region24
        $region23: #{tpu_custom_call.1} parent=11 // pred_region
          %188 = vsyncadd [#allocation6], 0
          %s189 = sshll.u32 %s3, 4
          %s190 = int_to_ptr.hbm [resolvable:$true] %s189
          %s191 = sshll.u32 [#allocation7], 4
          %s192 = int_to_ptr.vmem [resolvable:$true] %s191
          %197 = dma.hbm_to_vmem [thread:$0]  %s190, 2048, %s192, [#allocation6], 128, 128, 8
        $region24: #{tpu_custom_call.1} parent=11 // pred_fallthru
          _
        // Predicated region
        $region25: #{tpu_custom_call.1} parent=11 // pred_check
          %p198 = pneg %p128
        $region26: #{tpu_custom_call.1} parent=11 // pred_check_branch
          %200 = sbr.rel (%p198) target = $region28
        $region27: #{tpu_custom_call.1} parent=11 // pred_region
          _
        $region28: #{tpu_custom_call.1} parent=11 // pred_fallthru
          _
      $region12: #{tpu_custom_call.1} parent=5 // pred_fallthru
        _
      %p201 = scmp.lt.s32.totalorder %s18, 2
      // Predicated region
      $region29: #{tpu_custom_call.1} parent=5 // pred_check
        %p202 = pneg %p201
      $region30: #{tpu_custom_call.1} parent=5 // pred_check_branch
        %204 = sbr.rel (%p202) target = $region32
      $region31: #{tpu_custom_call.1} parent=5 // pred_region
        // Predicated region
        $region33: #{tpu_custom_call.1} parent=31 // pred_check
          %p205 = pneg %p38
        $region34: #{tpu_custom_call.1} parent=31 // pred_check_branch
          %207 = sbr.rel (%p205) target = $region36
        $region35: #{tpu_custom_call.1} parent=31 // pred_region
          %s208 = sand.u32 %s28, 1
          %s209 = scalar_lea.sflag [#allocation3], %s208
          %s210 = sand.u32 %s28, 1
          %s211 = smul.addr %s210, 64
          %s212 = scalar_lea.vmem [#allocation2], %s211
          %s213 = smul.u32 8, %s18
          %215 = vsyncadd %s209, 0
          %s216 = smul.addr %s213, 8
          %s217 = scalar_lea.hbm %s0, %s216
          %s218 = sshll.u32 %s217, 4
          %s219 = int_to_ptr.hbm [resolvable:$true] %s218
          %s220 = sshll.u32 %s212, 4
          %s221 = int_to_ptr.vmem [resolvable:$true] %s220
          %226 = dma.hbm_to_vmem [thread:$0]  %s219, 1024, %s221, %s209, 128, 128, 8
        $region36: #{tpu_custom_call.1} parent=31 // pred_fallthru
          _
      $region32: #{tpu_custom_call.1} parent=5 // pred_fallthru
        _
      %p227 = scmp.le.s32.totalorder 1, %s18
      %p228 = scmp.lt.s32.totalorder %s18, 3
      %p229 = pnand %p227, %p228
      %p230 = pneg %p229
      // Predicated region
      $region37: #{tpu_custom_call.1} parent=5 // pred_check
        _
      $region38: #{tpu_custom_call.1} parent=5 // pred_check_branch
        %232 = sbr.rel (%p229) target = $region40
      $region39: #{tpu_custom_call.1} parent=5 // pred_region
        %s233 = ssub.s32 %s18, 1
        %s234 = sand.u32 %s31, 1
        %s235 = scalar_lea.sflag [#allocation3], %s234
        %s236 = sand.u32 %s31, 1
        %s237 = smul.addr %s236, 64
        %s238 = scalar_lea.vmem [#allocation2], %s237
        // Predicated region
        $region41: #{tpu_custom_call.1} parent=39 // pred_check
          %p239 = pneg %p44
        $region42: #{tpu_custom_call.1} parent=39 // pred_check_branch
          %241 = sbr.rel (%p239) target = $region44
        $region43: #{tpu_custom_call.1} parent=39 // pred_region
          %243 = dma.done %s235, 1024
        $region44: #{tpu_custom_call.1} parent=39 // pred_fallthru
          _
        // Predicated region
        $region45: #{tpu_custom_call.1} parent=39 // pred_check
          %p244 = pneg %p65
        $region46: #{tpu_custom_call.1} parent=39 // pred_check_branch
          %246 = sbr.rel (%p244) target = $region48
        $region47: #{tpu_custom_call.1} parent=39 // pred_region
          %248 = dma.done [#allocation6], 16
        $region48: #{tpu_custom_call.1} parent=39 // pred_fallthru
          _
        // Predicated region
        $region49: #{tpu_custom_call.1} parent=39 // pred_check
          %p249 = pneg %p107
        $region50: #{tpu_custom_call.1} parent=39 // pred_check_branch
          %251 = sbr.rel (%p249) target = $region52
        $region51: #{tpu_custom_call.1} parent=39 // pred_region
          %253 = dma.done [#allocation6], 2048
        $region52: #{tpu_custom_call.1} parent=39 // pred_fallthru
          _
        %s254 = sand.u32 %s31, 1
        %s255 = scalar_lea.sflag [#allocation3], %s254
        %s256 = sand.u32 %s31, 1
        %s257 = smul.addr %s256, 64
        %s258 = scalar_lea.vmem [#allocation2], %s257
        %p259 = pneg %p44
        %p260 = pneg %p41
        %p261 = pneg %p65
        %p262 = pneg %p62
        %p263 = pneg %p86
        %p264 = pneg %p83
        %p265 = pneg %p107
        %p266 = pneg %p104
        %p267 = pneg %p128
        %p268 = pneg %p125
        %p269 = pneg %p154
        %p270 = pneg %p151
        %s271 = sand.u32 %s141, 1
        %s272 = scalar_lea.sflag [#allocation4], %s271
        %s273 = sand.u32 %s141, 1
        %s274 = smul.addr %s273, 64
        %s275 = scalar_lea.vmem [#allocation8], %s274
        %s276 = smul.u32 8, %s23
        %s277 = smul.u32 8, %s23
        %v278 = vld [vmem:[%s238] sm:$0xff]
        %v279 = vld [vmem:[%s238 + $0x8] sm:$0xff]
        %v280 = vld [vmem:[%s238 + $0x10] sm:$0xff]
        %v281 = vld [vmem:[%s238 + $0x18] sm:$0xff]
        %v282 = vld [vmem:[%s238 + $0x20] sm:$0xff]
        %v283 = vld [vmem:[%s238 + $0x28] sm:$0xff]
        %v284 = vld [vmem:[%s238 + $0x30] sm:$0xff]
        %v285 = vld [vmem:[%s238 + $0x38] sm:$0xff]
        %286 = vadd.xlane.f32.xlu0 %v278
        %v287 = vpop.xlane.xlu0 %286
        %288 = vadd.xlane.f32.xlu0 %v279
        %v289 = vpop.xlane.xlu0 %288
        %290 = vadd.xlane.f32.xlu0 %v280
        %v291 = vpop.xlane.xlu0 %290
        %292 = vadd.xlane.f32.xlu0 %v281
        %v293 = vpop.xlane.xlu0 %292
        %294 = vadd.xlane.f32.xlu0 %v282
        %v295 = vpop.xlane.xlu0 %294
        %296 = vadd.xlane.f32.xlu0 %v283
        %v297 = vpop.xlane.xlu0 %296
        %298 = vadd.xlane.f32.xlu0 %v284
        %v299 = vpop.xlane.xlu0 %298
        %300 = vadd.xlane.f32.xlu0 %v285
        %v301 = vpop.xlane.xlu0 %300
        %v302 = vrcp.pop 128.0
        %v303 = vmul.f32 128.0, %v302
        %v304 = vsub.f32 1.0, %v303
        %v305 = vmul.f32 %v302, %v304
        %v306 = vadd.f32 %v302, %v305
        %vm307 = vweird.f32 %v302
        %v308 = vsel %vm307, %v302, %v306
        %v309 = vmul.f32 %v287, %v308
        %v310 = vmul.f32 %v289, %v308
        %v311 = vmul.f32 %v291, %v308
        %v312 = vmul.f32 %v293, %v308
        %v313 = vmul.f32 %v295, %v308
        %v314 = vmul.f32 %v297, %v308
        %v315 = vmul.f32 %v299, %v308
        %v316 = vmul.f32 %v301, %v308
        %v317 = vmul.f32 %v278, %v278
        %v318 = vmul.f32 %v279, %v279
        %v319 = vmul.f32 %v280, %v280
        %v320 = vmul.f32 %v281, %v281
        %v321 = vmul.f32 %v282, %v282
        %v322 = vmul.f32 %v283, %v283
        %v323 = vmul.f32 %v284, %v284
        %v324 = vmul.f32 %v285, %v285
        %325 = vadd.xlane.f32.xlu0 %v317
        %v326 = vpop.xlane.xlu0 %325
        %327 = vadd.xlane.f32.xlu0 %v318
        %v328 = vpop.xlane.xlu0 %327
        %329 = vadd.xlane.f32.xlu0 %v319
        %v330 = vpop.xlane.xlu0 %329
        %331 = vadd.xlane.f32.xlu0 %v320
        %v332 = vpop.xlane.xlu0 %331
        %333 = vadd.xlane.f32.xlu0 %v321
        %v334 = vpop.xlane.xlu0 %333
        %335 = vadd.xlane.f32.xlu0 %v322
        %v336 = vpop.xlane.xlu0 %335
        %337 = vadd.xlane.f32.xlu0 %v323
        %v338 = vpop.xlane.xlu0 %337
        %339 = vadd.xlane.f32.xlu0 %v324
        %v340 = vpop.xlane.xlu0 %339
        %v341 = vmul.f32 %v326, %v308
        %v342 = vmul.f32 %v328, %v308
        %v343 = vmul.f32 %v330, %v308
        %v344 = vmul.f32 %v332, %v308
        %v345 = vmul.f32 %v334, %v308
        %v346 = vmul.f32 %v336, %v308
        %v347 = vmul.f32 %v338, %v308
        %v348 = vmul.f32 %v340, %v308
        %v349 = vmul.f32 %v309, %v309
        %v350 = vmul.f32 %v310, %v310
        %v351 = vmul.f32 %v311, %v311
        %v352 = vmul.f32 %v312, %v312
        %v353 = vmul.f32 %v313, %v313
        %v354 = vmul.f32 %v314, %v314
        %v355 = vmul.f32 %v315, %v315
        %v356 = vmul.f32 %v316, %v316
        %v357 = vsub.f32 %v341, %v349
        %v358 = vsub.f32 %v342, %v350
        %v359 = vsub.f32 %v343, %v351
        %v360 = vsub.f32 %v344, %v352
        %v361 = vsub.f32 %v345, %v353
        %v362 = vsub.f32 %v346, %v354
        %v363 = vsub.f32 %v347, %v355
        %v364 = vsub.f32 %v348, %v356
        %v365 = vadd.f32 %v357, 1e-05
        %v366 = vadd.f32 %v358, 1e-05
        %v367 = vadd.f32 %v359, 1e-05
        %v368 = vadd.f32 %v360, 1e-05
        %v369 = vadd.f32 %v361, 1e-05
        %v370 = vadd.f32 %v362, 1e-05
        %v371 = vadd.f32 %v363, 1e-05
        %v372 = vadd.f32 %v364, 1e-05
        %v373 = vrsqrt.pop %v365
        %v374 = vmul.f32 %v373, %v365
        %v375 = vmul.f32 %v374, %v373
        %v376 = vmul.f32 0.5, %v375
        %v377 = vsub.f32 1.5, %v376
        %v378 = vmul.f32 %v373, %v377
        %vm379 = vweird.f32 %v365
        %vm380 = vweird.f32 %v373
        %vm381 = vmor %vm379, %vm380
        %v382 = vsel %vm381, %v373, %v378
        %v383 = vrsqrt.pop %v366
        %v384 = vmul.f32 %v383, %v366
        %v385 = vmul.f32 %v384, %v383
        %v386 = vmul.f32 0.5, %v385
        %v387 = vsub.f32 1.5, %v386
        %v388 = vmul.f32 %v383, %v387
        %vm389 = vweird.f32 %v366
        %vm390 = vweird.f32 %v383
        %vm391 = vmor %vm389, %vm390
        %v392 = vsel %vm391, %v383, %v388
        %v393 = vrsqrt.pop %v367
        %v394 = vmul.f32 %v393, %v367
        %v395 = vmul.f32 %v394, %v393
        %v396 = vmul.f32 0.5, %v395
        %v397 = vsub.f32 1.5, %v396
        %v398 = vmul.f32 %v393, %v397
        %vm399 = vweird.f32 %v367
        %vm400 = vweird.f32 %v393
        %vm401 = vmor %vm399, %vm400
        %v402 = vsel %vm401, %v393, %v398
        %v403 = vrsqrt.pop %v368
        %v404 = vmul.f32 %v403, %v368
        %v405 = vmul.f32 %v404, %v403
        %v406 = vmul.f32 0.5, %v405
        %v407 = vsub.f32 1.5, %v406
        %v408 = vmul.f32 %v403, %v407
        %vm409 = vweird.f32 %v368
        %vm410 = vweird.f32 %v403
        %vm411 = vmor %vm409, %vm410
        %v412 = vsel %vm411, %v403, %v408
        %v413 = vrsqrt.pop %v369
        %v414 = vmul.f32 %v413, %v369
        %v415 = vmul.f32 %v414, %v413
        %v416 = vmul.f32 0.5, %v415
        %v417 = vsub.f32 1.5, %v416
        %v418 = vmul.f32 %v413, %v417
        %vm419 = vweird.f32 %v369
        %vm420 = vweird.f32 %v413
        %vm421 = vmor %vm419, %vm420
        %v422 = vsel %vm421, %v413, %v418
        %v423 = vrsqrt.pop %v370
        %v424 = vmul.f32 %v423, %v370
        %v425 = vmul.f32 %v424, %v423
        %v426 = vmul.f32 0.5, %v425
        %v427 = vsub.f32 1.5, %v426
        %v428 = vmul.f32 %v423, %v427
        %vm429 = vweird.f32 %v370
        %vm430 = vweird.f32 %v423
        %vm431 = vmor %vm429, %vm430
        %v432 = vsel %vm431, %v423, %v428
        %v433 = vrsqrt.pop %v371
        %v434 = vmul.f32 %v433, %v371
        %v435 = vmul.f32 %v434, %v433
        %v436 = vmul.f32 0.5, %v435
        %v437 = vsub.f32 1.5, %v436
        %v438 = vmul.f32 %v433, %v437
        %vm439 = vweird.f32 %v371
        %vm440 = vweird.f32 %v433
        %vm441 = vmor %vm439, %vm440
        %v442 = vsel %vm441, %v433, %v438
        %v443 = vrsqrt.pop %v372
        %v444 = vmul.f32 %v443, %v372
        %v445 = vmul.f32 %v444, %v443
        %v446 = vmul.f32 0.5, %v445
        %v447 = vsub.f32 1.5, %v446
        %v448 = vmul.f32 %v443, %v447
        %vm449 = vweird.f32 %v372
        %vm450 = vweird.f32 %v443
        %vm451 = vmor %vm449, %vm450
        %v452 = vsel %vm451, %v443, %v448
        %v453 = vld [vmem:[#allocation5] sm:$0x1]
        %v455 = vperm.slane %v453, 0
        %v457 = vmul.f32 %v382, %v455
        %v458 = vmul.f32 %v392, %v455
        %v459 = vmul.f32 %v402, %v455
        %v460 = vmul.f32 %v412, %v455
        %v461 = vmul.f32 %v422, %v455
        %v462 = vmul.f32 %v432, %v455
        %v463 = vmul.f32 %v442, %v455
        %v464 = vmul.f32 %v452, %v455
        %v465 = vld [vmem:[%s2] sm:$0x1]
        %v466 = vmul.f32 %v309, %v457
        %v467 = vmul.f32 %v310, %v458
        %v468 = vmul.f32 %v311, %v459
        %v469 = vmul.f32 %v312, %v460
        %v470 = vmul.f32 %v313, %v461
        %v471 = vmul.f32 %v314, %v462
        %v472 = vmul.f32 %v315, %v463
        %v473 = vmul.f32 %v316, %v464
        %v475 = vperm.slane %v465, 0
        %v477 = vsub.f32 %v475, %v466
        %v478 = vsub.f32 %v475, %v467
        %v479 = vsub.f32 %v475, %v468
        %v480 = vsub.f32 %v475, %v469
        %v481 = vsub.f32 %v475, %v470
        %v482 = vsub.f32 %v475, %v471
        %v483 = vsub.f32 %v475, %v472
        %v484 = vsub.f32 %v475, %v473
        %v485 = vmul.f32 %v278, %v457
        %v486 = vmul.f32 %v279, %v458
        %v487 = vmul.f32 %v280, %v459
        %v488 = vmul.f32 %v281, %v460
        %v489 = vmul.f32 %v282, %v461
        %v490 = vmul.f32 %v283, %v462
        %v491 = vmul.f32 %v284, %v463
        %v492 = vmul.f32 %v285, %v464
        %v493 = vadd.f32 %v485, %v477
        %v494 = vadd.f32 %v486, %v478
        %v495 = vadd.f32 %v487, %v479
        %v496 = vadd.f32 %v488, %v480
        %v497 = vadd.f32 %v489, %v481
        %v498 = vadd.f32 %v490, %v482
        %v499 = vadd.f32 %v491, %v483
        %v500 = vadd.f32 %v492, %v484
        %v501 = vld [vmem:[#allocation7] sm:$0xff]
        %v502 = vld [vmem:[#allocation7 + $0x8] sm:$0xff]
        %v503 = vld [vmem:[#allocation7 + $0x10] sm:$0xff]
        %v504 = vld [vmem:[#allocation7 + $0x18] sm:$0xff]
        %v505 = vld [vmem:[#allocation7 + $0x20] sm:$0xff]
        %v506 = vld [vmem:[#allocation7 + $0x28] sm:$0xff]
        %v507 = vld [vmem:[#allocation7 + $0x30] sm:$0xff]
        %v508 = vld [vmem:[#allocation7 + $0x38] sm:$0xff]
        %v509 = vld [vmem:[#allocation7 + $0x40] sm:$0xff]
        %v510 = vld [vmem:[#allocation7 + $0x48] sm:$0xff]
        %v511 = vld [vmem:[#allocation7 + $0x50] sm:$0xff]
        %v512 = vld [vmem:[#allocation7 + $0x58] sm:$0xff]
        %v513 = vld [vmem:[#allocation7 + $0x60] sm:$0xff]
        %v514 = vld [vmem:[#allocation7 + $0x68] sm:$0xff]
        %v515 = vld [vmem:[#allocation7 + $0x70] sm:$0xff]
        %v516 = vld [vmem:[#allocation7 + $0x78] sm:$0xff]
        %v517 = vld [vmem:[%s4] sm:$0x1]
        %v519 = vperm.slane %v517, 0
        %521 = vmatpush.msra.mxu0 %v516
        %522 = vmatpush.msra.mxu0 %v515
        %523 = vmatpush.msra.mxu0 %v514
        %524 = vmatpush.msra.mxu0 %v513
        %525 = vmatpush.msra.mxu0 %v512
        %526 = vmatpush.msra.mxu0 %v511
        %527 = vmatpush.msra.mxu0 %v510
        %528 = vmatpush.msra.mxu0 %v509
        %529 = vmatpush.msra.mxu0 %v508
        %530 = vmatpush.msra.mxu0 %v507
        %531 = vmatpush.msra.mxu0 %v506
        %532 = vmatpush.msra.mxu0 %v505
        %533 = vmatpush.msra.mxu0 %v504
        %534 = vmatpush.msra.mxu0 %v503
        %535 = vmatpush.msra.mxu0 %v502
        %536 = vmatpush.msra.mxu0 %v501
        %537 = vmatmul.f32.gmra.mxu0 %v493
        %v538 = vpop.f32.mrf.mxu0
        %v539 = vadd.f32 %v519, %v538
        %540 = vmatmul.f32.gmra.mxu0 %v494
        %v541 = vpop.f32.mrf.mxu0
        %v542 = vadd.f32 %v519, %v541
        %543 = vmatmul.f32.gmra.mxu0 %v495
        %v544 = vpop.f32.mrf.mxu0
        %v545 = vadd.f32 %v519, %v544
        %546 = vmatmul.f32.gmra.mxu0 %v496
        %v547 = vpop.f32.mrf.mxu0
        %v548 = vadd.f32 %v519, %v547
        %549 = vmatmul.f32.gmra.mxu0 %v497
        %v550 = vpop.f32.mrf.mxu0
        %v551 = vadd.f32 %v519, %v550
        %552 = vmatmul.f32.gmra.mxu0 %v498
        %v553 = vpop.f32.mrf.mxu0
        %v554 = vadd.f32 %v519, %v553
        %555 = vmatmul.f32.gmra.mxu0 %v499
        %v556 = vpop.f32.mrf.mxu0
        %v557 = vadd.f32 %v519, %v556
        %558 = vmatmul.f32.gmra.mxu0 %v500
        %v559 = vpop.f32.mrf.mxu0
        %v560 = vadd.f32 %v519, %v559
        %561 = vdwg.mxu0
        %v562 = vadd.f32 %v539, %v278
        %v563 = vadd.f32 %v542, %v279
        %v564 = vadd.f32 %v545, %v280
        %v565 = vadd.f32 %v548, %v281
        %v566 = vadd.f32 %v551, %v282
        %v567 = vadd.f32 %v554, %v283
        %v568 = vadd.f32 %v557, %v284
        %v569 = vadd.f32 %v560, %v285
        %570 = vst [vmem:[%s275] sm:$0xff] %v562
        %571 = vst [vmem:[%s275 + $0x8] sm:$0xff] %v563
        %572 = vst [vmem:[%s275 + $0x10] sm:$0xff] %v564
        %573 = vst [vmem:[%s275 + $0x18] sm:$0xff] %v565
        %574 = vst [vmem:[%s275 + $0x20] sm:$0xff] %v566
        %575 = vst [vmem:[%s275 + $0x28] sm:$0xff] %v567
        %576 = vst [vmem:[%s275 + $0x30] sm:$0xff] %v568
        %577 = vst [vmem:[%s275 + $0x38] sm:$0xff] %v569
        %s578 = sand.u32 %s141, 1
        %s579 = scalar_lea.sflag [#allocation4], %s578
        %s580 = sand.u32 %s141, 1
        %s581 = smul.addr %s580, 64
        %s582 = scalar_lea.vmem [#allocation8], %s581
        // Predicated region
        $region53: #{tpu_custom_call.1} parent=39 // pred_check
          %p583 = pneg %p151
        $region54: #{tpu_custom_call.1} parent=39 // pred_check_branch
          %585 = sbr.rel (%p583) target = $region56
        $region55: #{tpu_custom_call.1} parent=39 // pred_region
          %s586 = smul.u32 8, %s23
          %588 = vsyncadd %s579, 0
          %s589 = smul.addr %s586, 8
          %s590 = scalar_lea.hbm %s5, %s589
          %s591 = sshll.u32 %s582, 4
          %s592 = int_to_ptr.vmem [resolvable:$true] %s591
          %s593 = sshll.u32 %s590, 4
          %s594 = int_to_ptr.hbm [resolvable:$true] %s593
          %599 = dma.vmem_to_hbm [thread:$0]  %s592, 1024, %s594, %s579, 128, 128, 8
        $region56: #{tpu_custom_call.1} parent=39 // pred_fallthru
          _
      $region40: #{tpu_custom_call.1} parent=5 // pred_fallthru
        _
      %p600 = scmp.le.s32.totalorder 2, %s18
      // Predicated region
      $region57: #{tpu_custom_call.1} parent=5 // pred_check
        %p601 = pneg %p600
      $region58: #{tpu_custom_call.1} parent=5 // pred_check_branch
        %603 = sbr.rel (%p601) target = $region60
      $region59: #{tpu_custom_call.1} parent=5 // pred_region
        %s604 = ssub.s32 %s18, 2
        // Predicated region
        $region61: #{tpu_custom_call.1} parent=59 // pred_check
          %p605 = pneg %p157
        $region62: #{tpu_custom_call.1} parent=59 // pred_check_branch
          %607 = sbr.rel (%p605) target = $region64
        $region63: #{tpu_custom_call.1} parent=59 // pred_region
          %s608 = sand.u32 %s142, 1
          %s609 = scalar_lea.sflag [#allocation4], %s608
          %s610 = sand.u32 %s142, 1
          %s611 = smul.addr %s610, 64
          %s612 = scalar_lea.vmem [#allocation8], %s611
          %614 = dma.done %s609, 1024
        $region64: #{tpu_custom_call.1} parent=59 // pred_fallthru
          _
      $region60: #{tpu_custom_call.1} parent=5 // pred_fallthru
        _
    $region6: #{tpu_custom_call.1} parent=1 // loop_footer
      %s22 = sadd.s32 1, %s18
    $region7: #{tpu_custom_call.1} parent=1 // loop_footer_branch
      %17 = sbr.rel target = $region3
    $region8: #{tpu_custom_call.1} parent=1 // loop_exit
      _
    %615 = vsyncpa [#allocation3], 1
    %s616 = scalar_lea.sflag [#allocation3], 1
    %617 = vsyncpa %s616, 1
    %618 = vsyncpa [#allocation6], 1
    %619 = vsyncpa [#allocation4], 1
    %s620 = scalar_lea.sflag [#allocation4], 1
    %621 = vsyncpa %s620, 1

</llo_original>
